<compile_context>
chip_gen: v7x
topology: tpu7x:2x2x1
jax: 0.10.0
libtpu: 0.0.40
codegen_flags: <defaults>
</compile_context>

<pallas_src>
import jax
import jax.numpy as jnp
from jax.experimental import pallas as pl
from jax.experimental.pallas import tpu as pltpu


def _ce_kernel(pred_ref, kps_ref, sum_ref, cnt_ref, acc_sum, acc_cnt):
    # grid = (num_cores [parallel], row_tiles_per_core [arbitrary/reduction])
    i = pl.program_id(1)

    @pl.when(i == 0)
    def _():
        acc_sum[...] = jnp.zeros_like(acc_sum)
        acc_cnt[...] = jnp.zeros_like(acc_cnt)

    logits = pred_ref[...].astype(jnp.float32)             # (tb, C) f32 math
    tgt = kps_ref[...]                                      # (tb, 1) int32

    # numerically-stable logsumexp per row (lane reduces -> XLU, exp -> EUP)
    m = jnp.max(logits, axis=-1, keepdims=True)             # (tb, 1)
    lse = jnp.log(jnp.sum(jnp.exp(logits - m), axis=-1, keepdims=True)) + m

    # gather the target logit with a one-hot lane mask (lane iota == target).
    # NOTE: an out-of-range valid target (kps >= C) silently contributes 0 here
    # instead of raising like PyTorch does.
    col = jax.lax.broadcasted_iota(jnp.int32, logits.shape, 1)
    tgt_logit = jnp.sum(jnp.where(col == tgt, logits, 0.0),
                        axis=-1, keepdims=True)              # (tb, 1)

    valid = tgt != -1                                        # (tb, 1) bool

    # vector-shaped accumulation; no per-step scalar reduce
    acc_sum[...] += jnp.where(valid, lse - tgt_logit, 0.0)
    acc_cnt[...] += valid.astype(jnp.float32)

    @pl.when(i == pl.num_programs(1) - 1)
    def _():
        # single cross-sublane reduce in the epilogue; splat the scalar across
        # the lane-dense (8, 128) partial-output block for this core.
        sum_ref[...] = jnp.zeros(sum_ref.shape, jnp.float32) + jnp.sum(acc_sum[...])
        cnt_ref[...] = jnp.zeros(cnt_ref.shape, jnp.float32) + jnp.sum(acc_cnt[...])


def _round_up(x, m):
    return ((x + m - 1) // m) * m


def _pick_tile(N, C, itemsize, requested, num_cores, budget_bytes):
    """Largest row tile (multiple of 16) that fits a conservative VMEM budget."""
    # per-row VMEM footprint: double-buffered pred tile + lane-padded kps block
    # + conservative bound on f32 temporaries materialized by the compiler.
    per_row = 2 * C * itemsize + 2 * 128 * 4 + 4 * C * 4
    tb = min(requested, max(16, budget_bytes // per_row))
    # keep both cores busy when N is small relative to the requested tile
    tb = min(tb, _round_up(-(-N // num_cores), 16))
    tb = max(16, (tb // 16) * 16)          # multiple of 16 (bf16-safe sublanes)
    return int(tb)


def benchmark_loss(pred, kps, *, tb=1024, num_cores=2):
    """pred: (N, C) float32/bfloat16 logits, kps: (N,) int targets, ignore_index=-1."""
    N, C = pred.shape
    itemsize = jnp.dtype(pred.dtype).itemsize
    tb = _pick_tile(N, C, itemsize, tb, num_cores, budget_bytes=24 * 1024 * 1024)

    # --- pad ragged batch with ignore_index rows ------------------------------
    total_tiles = _round_up(-(-N // tb), num_cores)
    tiles_per_core = total_tiles // num_cores
    n_pad = total_tiles * tb

    kps2d = kps.astype(jnp.int32).reshape(N, 1)
    if n_pad != N:
        pred = jnp.pad(pred, ((0, n_pad - N), (0, 0)))
        kps2d = jnp.pad(kps2d, ((0, n_pad - N), (0, 0)), constant_values=-1)

    sum_out, cnt_out = pl.pallas_call(
        _ce_kernel,
        out_shape=(
            jax.ShapeDtypeStruct((num_cores * 8, 128), jnp.float32),
            jax.ShapeDtypeStruct((num_cores * 8, 128), jnp.float32),
        ),
        grid_spec=pltpu.PrefetchScalarGridSpec(
            num_scalar_prefetch=0,
            grid=(num_cores, tiles_per_core),
            in_specs=[
                pl.BlockSpec((tb, C), lambda c, i: (c * tiles_per_core + i, 0)),
                pl.BlockSpec((tb, 1), lambda c, i: (c * tiles_per_core + i, 0)),
            ],
            out_specs=[
                pl.BlockSpec((8, 128), lambda c, i: (c, 0)),
                pl.BlockSpec((8, 128), lambda c, i: (c, 0)),
            ],
            scratch_shapes=[
                pltpu.VMEM((tb, 1), jnp.float32),   # per-row loss accumulator
                pltpu.VMEM((tb, 1), jnp.float32),   # per-row valid-count accumulator
            ],
        ),
        compiler_params=pltpu.CompilerParams(
            dimension_semantics=("parallel", "arbitrary"),
            vmem_limit_bytes=48 * 1024 * 1024,
        ),
    )(pred, kps2d)

    part_sum = sum_out.reshape(num_cores, 8, 128)[:, 0, 0]
    part_cnt = cnt_out.reshape(num_cores, 8, 128)[:, 0, 0]
    # NOTE: if every target is -1, count == 0 and this yields NaN, matching
    # torch.nn.functional.cross_entropy on an all-ignored batch.
    return {"total": jnp.sum(part_sum) / jnp.sum(part_cnt)}


def _reference(pred, kps):
    pred = pred.astype(jnp.float32)
    lse = jax.scipy.special.logsumexp(pred, axis=-1)
    tgt = jnp.take_along_axis(
        pred, jnp.clip(kps, 0, pred.shape[1] - 1)[:, None], axis=-1
    )[:, 0]
    valid = kps != -1
    nll = jnp.where(valid, lse - tgt, 0.0)
    return jnp.sum(nll) / jnp.sum(valid.astype(jnp.float32))


if __name__ == "__main__":
    key = jax.random.PRNGKey(0)
    k1, k2, k3 = jax.random.split(key, 3)

    # small shapes consistent with the module: pred (N, C), kps (N,)
    N, C = 16, 128
    pred = jax.random.normal(k1, (N, C), dtype=jnp.float32)
    kps = jax.random.randint(k2, (N,), 0, C, dtype=jnp.int32)
    ignore_mask = jax.random.bernoulli(k3, 0.25, (N,))
    kps = jnp.where(ignore_mask, jnp.int32(-1), kps)

    # f32 path
    total = jax.block_until_ready(benchmark_loss(pred, kps)["total"])
    ref = _reference(pred, kps)
    assert jnp.allclose(total, ref, rtol=1e-5, atol=1e-5), (total, ref)

    # ragged batch + multiple row tiles + both-core split
    N2, C2 = 300, 256
    pred2 = jax.random.normal(k1, (N2, C2), dtype=jnp.float32)
    kps2 = jax.random.randint(k2, (N2,), 0, C2, dtype=jnp.int32)
    kps2 = jnp.where(jax.random.bernoulli(k3, 0.3, (N2,)), jnp.int32(-1), kps2)
    total2 = jax.block_until_ready(benchmark_loss(pred2, kps2)["total"])
    ref2 = _reference(pred2, kps2)
    assert jnp.allclose(total2, ref2, rtol=1e-5, atol=1e-5), (total2, ref2)

    # bf16 streaming path (HBM traffic halved; math stays f32 inside the kernel)
    total3 = jax.block_until_ready(
        benchmark_loss(pred.astype(jnp.bfloat16), kps)["total"]
    )
    assert jnp.allclose(total3, ref, rtol=3e-2, atol=3e-2), (total3, ref)

    print("KERNEL_OK")
</pallas_src>

<mosaic_0001>
module attributes {stable_mosaic.version = 11 : i64} {
  func.func @_ce_kernel(%arg0: i32, %arg1: i32, %arg2: memref<16x128xf32, #tpu.memory_space<vmem>>, %arg3: memref<16x1xi32, #tpu.memory_space<vmem>>, %arg4: memref<8x128xf32, #tpu.memory_space<vmem>>, %arg5: memref<8x128xf32, #tpu.memory_space<vmem>>, %arg6: memref<16x1xf32, #tpu.memory_space<vmem>>, %arg7: memref<16x1xf32, #tpu.memory_space<vmem>>) attributes {dimension_semantics = [#tpu.dimension_semantics<parallel>, #tpu.dimension_semantics<arbitrary>], iteration_bounds = array<i64: 2, 1>, scalar_prefetch = 0 : i64, scratch_operands = 2 : i64, tpu.core_type = #tpu.core_type<tc>, window_params = [{transform_indices = @transform_0, window_bounds = array<i64: 16, 128>}, {transform_indices = @transform_1, window_bounds = array<i64: 16, 1>}, {transform_indices = @transform_2, window_bounds = array<i64: 8, 128>}, {transform_indices = @transform_3, window_bounds = array<i64: 8, 128>}]} {
    %c0_i32 = arith.constant 0 : i32
    %0 = arith.cmpi eq, %arg1, %c0_i32 : i32
    %1 = arith.extui %0 : i1 to i32
    %c0_i32_0 = arith.constant 0 : i32
    %2 = arith.cmpi ne, %1, %c0_i32_0 : i32
    scf.if %2 {
      %cst_18 = arith.constant 0.000000e+00 : f32
      %37 = vector.broadcast %cst_18 : f32 to vector<16x1xf32>
      %c0_19 = arith.constant 0 : index
      %c0_20 = arith.constant 0 : index
      %38 = vector.load %arg6[%c0_19, %c0_20] : memref<16x1xf32, #tpu.memory_space<vmem>>, vector<16x1xf32>
      tpu.vector_store %arg6[%c0_19, %c0_20], %37 {strides = array<i32>} : memref<16x1xf32, #tpu.memory_space<vmem>>, vector<16x1xf32>,
      %cst_21 = arith.constant 0.000000e+00 : f32
      %39 = vector.broadcast %cst_21 : f32 to vector<16x1xf32>
      %c0_22 = arith.constant 0 : index
      %c0_23 = arith.constant 0 : index
      %40 = vector.load %arg7[%c0_22, %c0_23] : memref<16x1xf32, #tpu.memory_space<vmem>>, vector<16x1xf32>
      tpu.vector_store %arg7[%c0_22, %c0_23], %39 {strides = array<i32>} : memref<16x1xf32, #tpu.memory_space<vmem>>, vector<16x1xf32>,
    } else {
    }
    %c0 = arith.constant 0 : index
    %c0_1 = arith.constant 0 : index
    %3 = vector.load %arg2[%c0, %c0_1] : memref<16x128xf32, #tpu.memory_space<vmem>>, vector<16x128xf32>
    %c0_2 = arith.constant 0 : index
    %c0_3 = arith.constant 0 : index
    %4 = vector.load %arg3[%c0_2, %c0_3] : memref<16x1xi32, #tpu.memory_space<vmem>>, vector<16x1xi32>
    %cst = arith.constant dense<0xFF800000> : vector<16xf32>
    %5 = vector.multi_reduction <maximumf>, %3, %cst [1] : vector<16x128xf32> to vector<16xf32>
    %6 = vector.shape_cast %5 : vector<16xf32> to vector<16x1xf32>
    %7 = vector.broadcast %6 : vector<16x1xf32> to vector<16x128xf32>
    %8 = arith.subf %3, %7 : vector<16x128xf32>
    %9 = math.exp %8 : vector<16x128xf32>
    %cst_4 = arith.constant dense<0.000000e+00> : vector<16xf32>
    %10 = vector.multi_reduction <add>, %9, %cst_4 [1] : vector<16x128xf32> to vector<16xf32>
    %11 = vector.shape_cast %10 : vector<16xf32> to vector<16x1xf32>
    %12 = math.log %11 : vector<16x1xf32>
    %13 = arith.addf %12, %6 : vector<16x1xf32>
    %14 = tpu.iota {dimensions = array<i32: 1>} : vector<16x128xi32>
    %15 = vector.broadcast %4 : vector<16x1xi32> to vector<16x128xi32>
    %16 = arith.cmpi eq, %14, %15 : vector<16x128xi32>
    %cst_5 = arith.constant 0.000000e+00 : f32
    %17 = vector.broadcast %cst_5 : f32 to vector<16x128xf32>
    %18 = arith.select %16, %3, %17 : vector<16x128xi1>, vector<16x128xf32>
    %cst_6 = arith.constant dense<0.000000e+00> : vector<16xf32>
    %19 = vector.multi_reduction <add>, %18, %cst_6 [1] : vector<16x128xf32> to vector<16xf32>
    %20 = vector.shape_cast %19 : vector<16xf32> to vector<16x1xf32>
    %c-1_i32 = arith.constant -1 : i32
    %21 = vector.broadcast %c-1_i32 : i32 to vector<16x1xi32>
    %22 = arith.cmpi ne, %4, %21 : vector<16x1xi32>
    %c0_7 = arith.constant 0 : index
    %c0_8 = arith.constant 0 : index
    %23 = vector.load %arg6[%c0_7, %c0_8] : memref<16x1xf32, #tpu.memory_space<vmem>>, vector<16x1xf32>
    %24 = arith.subf %13, %20 : vector<16x1xf32>
    %cst_9 = arith.constant 0.000000e+00 : f32
    %25 = vector.broadcast %cst_9 : f32 to vector<16x1xf32>
    %26 = arith.select %22, %24, %25 : vector<16x1xi1>, vector<16x1xf32>
    %27 = arith.addf %23, %26 : vector<16x1xf32>
    %c0_10 = arith.constant 0 : index
    %c0_11 = arith.constant 0 : index
    %28 = vector.load %arg6[%c0_10, %c0_11] : memref<16x1xf32, #tpu.memory_space<vmem>>, vector<16x1xf32>
    tpu.vector_store %arg6[%c0_10, %c0_11], %27 {strides = array<i32>} : memref<16x1xf32, #tpu.memory_space<vmem>>, vector<16x1xf32>,
    %c0_12 = arith.constant 0 : index
    %c0_13 = arith.constant 0 : index
    %29 = vector.load %arg7[%c0_12, %c0_13] : memref<16x1xf32, #tpu.memory_space<vmem>>, vector<16x1xf32>
    %30 = arith.extui %22 : vector<16x1xi1> to vector<16x1xi32>
    %31 = arith.sitofp %30 : vector<16x1xi32> to vector<16x1xf32>
    %32 = arith.addf %29, %31 : vector<16x1xf32>
    %c0_14 = arith.constant 0 : index
    %c0_15 = arith.constant 0 : index
    %33 = vector.load %arg7[%c0_14, %c0_15] : memref<16x1xf32, #tpu.memory_space<vmem>>, vector<16x1xf32>
    tpu.vector_store %arg7[%c0_14, %c0_15], %32 {strides = array<i32>} : memref<16x1xf32, #tpu.memory_space<vmem>>, vector<16x1xf32>,
    %c0_i32_16 = arith.constant 0 : i32
    %34 = arith.cmpi eq, %arg1, %c0_i32_16 : i32
    %35 = arith.extui %34 : i1 to i32
    %c0_i32_17 = arith.constant 0 : i32
    %36 = arith.cmpi ne, %35, %c0_i32_17 : i32
    scf.if %36 {
      %cst_18 = arith.constant 0.000000e+00 : f32
      %37 = vector.broadcast %cst_18 : f32 to vector<8x128xf32>
      %c0_19 = arith.constant 0 : index
      %c0_20 = arith.constant 0 : index
      %38 = vector.load %arg6[%c0_19, %c0_20] : memref<16x1xf32, #tpu.memory_space<vmem>>, vector<16x1xf32>
      %39 = vector.shape_cast %38 : vector<16x1xf32> to vector<1x16x1xf32>
      %cst_21 = arith.constant dense<0.000000e+00> : vector<1xf32>
      %40 = vector.multi_reduction <add>, %39, %cst_21 [1, 2] : vector<1x16x1xf32> to vector<1xf32>
      %41 = vector.shape_cast %40 : vector<1xf32> to vector<1x1x1xf32>
      %42 = vector.extract %41[0, 0, 0] : f32 from vector<1x1x1xf32>
      %43 = vector.broadcast %42 : f32 to vector<8x128xf32>
      %44 = arith.addf %37, %43 : vector<8x128xf32>
      %c0_22 = arith.constant 0 : index
      %c0_23 = arith.constant 0 : index
      %45 = vector.load %arg4[%c0_22, %c0_23] : memref<8x128xf32, #tpu.memory_space<vmem>>, vector<8x128xf32>
      tpu.vector_store %arg4[%c0_22, %c0_23], %44 {strides = array<i32>} : memref<8x128xf32, #tpu.memory_space<vmem>>, vector<8x128xf32>,
      %cst_24 = arith.constant 0.000000e+00 : f32
      %46 = vector.broadcast %cst_24 : f32 to vector<8x128xf32>
      %c0_25 = arith.constant 0 : index
      %c0_26 = arith.constant 0 : index
      %47 = vector.load %arg7[%c0_25, %c0_26] : memref<16x1xf32, #tpu.memory_space<vmem>>, vector<16x1xf32>
      %48 = vector.shape_cast %47 : vector<16x1xf32> to vector<1x16x1xf32>
      %cst_27 = arith.constant dense<0.000000e+00> : vector<1xf32>
      %49 = vector.multi_reduction <add>, %48, %cst_27 [1, 2] : vector<1x16x1xf32> to vector<1xf32>
      %50 = vector.shape_cast %49 : vector<1xf32> to vector<1x1x1xf32>
      %51 = vector.extract %50[0, 0, 0] : f32 from vector<1x1x1xf32>
      %52 = vector.broadcast %51 : f32 to vector<8x128xf32>
      %53 = arith.addf %46, %52 : vector<8x128xf32>
      %c0_28 = arith.constant 0 : index
      %c0_29 = arith.constant 0 : index
      %54 = vector.load %arg5[%c0_28, %c0_29] : memref<8x128xf32, #tpu.memory_space<vmem>>, vector<8x128xf32>
      tpu.vector_store %arg5[%c0_28, %c0_29], %53 {strides = array<i32>} : memref<8x128xf32, #tpu.memory_space<vmem>>, vector<8x128xf32>,
    } else {
    }
    return
  }
  func.func @transform_0(%arg0: i32, %arg1: i32) -> (i32, i32) {
    %c1_i32 = arith.constant 1 : i32
    %0 = arith.muli %arg0, %c1_i32 : i32
    %1 = arith.addi %0, %arg1 : i32
    %c0_i32 = arith.constant 0 : i32
    %c0_i32_0 = arith.constant 0 : i32
    return %1, %c0_i32 : i32, i32
  }
  func.func @transform_1(%arg0: i32, %arg1: i32) -> (i32, i32) {
    %c1_i32 = arith.constant 1 : i32
    %0 = arith.muli %arg0, %c1_i32 : i32
    %1 = arith.addi %0, %arg1 : i32
    %c0_i32 = arith.constant 0 : i32
    %c0_i32_0 = arith.constant 0 : i32
    return %1, %c0_i32 : i32, i32
  }
  func.func @transform_2(%arg0: i32, %arg1: i32) -> (i32, i32) {
    %c0_i32 = arith.constant 0 : i32
    %c0_i32_0 = arith.constant 0 : i32
    return %arg0, %c0_i32 : i32, i32
  }
  func.func @transform_3(%arg0: i32, %arg1: i32) -> (i32, i32) {
    %c0_i32 = arith.constant 0 : i32
    %c0_i32_0 = arith.constant 0 : i32
    return %arg0, %c0_i32 : i32, i32
  }
}

</mosaic_0001>

<llo_original>
// kernel: tpu_custom_call.1
$region0: #{tpu_custom_call.1}
  #allocation0 [shape = 'u32[]', space=smem, size = 0x4, offset = 0x4, fixed_abs, tag = 'smem constant byte address 0x4 - core index']
  #allocation1 [shape = 'u32[144,128]{1,0:T(1,128)}', space=vmem, size = 0x12000, scoped, tag = 'internal scratch']
  #allocation2 [shape = 'f32[16,1]{1,0:T(8,128)}', space=vmem, size = 0x2000, scoped, tag = 'scratch operand']
  #allocation3 [shape = 'f32[16,1]{1,0:T(8,128)}', space=vmem, size = 0x2000, scoped, tag = 'scratch operand']
  %s0 = inlined_call_operand.vmem [shape: f32[32,128], index: 0, kind: input, shape index: {}]
  %s1 = inlined_call_operand.vmem [shape: s32[32,1], index: 1, kind: input, shape index: {}]
  %s2 = inlined_call_operand.hbm [shape: f32[16,128], index: 2, kind: output, shape index: {0}]
  %s3 = inlined_call_operand.hbm [shape: f32[16,128], index: 3, kind: output, shape index: {1}]
  %4 = xla_tuple %s2, %s3
  %s5 = sld [smem:[#allocation0]]
  $region57: #{tpu_custom_call.1} parent=0
    _
  %s7 = ssub.s32 1, %s5
  %s8 = scalar_select 0, %s7, %s5
  $region1: #{tpu_custom_call.1} parent=0
    #allocation4 [shape = 'u8[8192]{0}', space=vmem, size = 0x2000, scoped, tag = 'output window, operand 0']
    #allocation5 [shape = 's32[2]{0}', space=sflag, size = 0x8, scoped, tag = 'scoped memory for tpu_custom_call.1']
    #allocation6 [shape = 'u8[8192]{0}', space=vmem, size = 0x2000, scoped, tag = 'output window, operand 1']
    #allocation7 [shape = 's32[2]{0}', space=sflag, size = 0x8, scoped, tag = 'scoped memory for tpu_custom_call.1']
    %9 = vsyncpa [#allocation5], 0
    %s10 = scalar_lea.sflag [#allocation5], 1
    %11 = vsyncpa %s10, 0
    %12 = vsyncpa [#allocation7], 0
    %s13 = scalar_lea.sflag [#allocation7], 1
    %14 = vsyncpa %s13, 0
    loop: start=0, step=1, limit=4
    $region2: #{tpu_custom_call.1} parent=1 // loop_pre_header
      _
    $region3: #{tpu_custom_call.1} parent=1 // loop_header
      %s16 = sphi 0, %s20
      %p17 = scmp.ge.s32.totalorder %s16, 4
      %s23 = sphi 0, %s35
      %s24 = sphi 0, %s31
      %s25 = sphi 0, %s23
      %s26 = sphi 0, %s24
      %s27 = sphi 0, %s25
      %s28 = sphi 0, %s26
      %s40 = sphi 0, %s42
      %s43 = sphi 0, %s40
      %s44 = sphi 0, %s43
      %s60 = sphi 0, %s44
      %s68 = sphi 0, %s70
      %s71 = sphi 0, %s68
      %s72 = sphi 0, %s71
      %s88 = sphi 0, %s72
      %s94 = sphi 0, %s96
      %s97 = sphi 0, %s94
      %s98 = sphi 0, %s97
      %s114 = sphi 0, %s98
      %s120 = sphi 0, %s122
      %s123 = sphi 0, %s120
      %s124 = sphi 0, %s123
      %s140 = sphi 0, %s124
    $region4: #{tpu_custom_call.1} parent=1 // loop_header_branch
      %19 = sbr.rel (%p17) target = $region8
    $region5: #{tpu_custom_call.1} parent=1 // loop_body
      %s21 = ssub.s32 %s16, 1
      %s22 = ssub.s32 %s16, 2
      %s29 = sadd.s32 1, %s24
      %p30 = scmp.ge.s32.totalorder %s29, 1
      %s31 = scalar_select %p30, 0, %s29
      %s32 = sadd.s32 1, %s23
      %s33 = scalar_select %p30, %s32, %s23
      %p34 = scmp.ge.s32.totalorder %s33, 2
      %s35 = scalar_select %p34, 0, %s33
      %s36 = sadd.s32 %s23, %s24
      %s37 = sadd.s32 %s35, %s31
      %s38 = ssub.s32 %s36, %s37
      %p39 = scmp.eq.s32.totalorder %s38, 0
      %s41 = sadd.s32 %s40, 1
      %s42 = scalar_select %p39, %s40, %s41
      %p45 = pneg %p39
      %p46 = scmp.eq.s32.totalorder %s16, 1
      %p47 = por %p45, %p46
      %p48 = scmp.ne.s32.totalorder %s40, %s43
      %p49 = scmp.eq.s32.totalorder %s16, 0
      %p50 = por %p48, %p49
      %p51 = scmp.ne.s32.totalorder %s40, %s43
      %p52 = scmp.eq.s32.totalorder %s21, 1
      %p53 = por %p51, %p52
      %p54 = scmp.ne.s32.totalorder %s43, %s44
      %p55 = scmp.eq.s32.totalorder %s21, 0
      %p56 = por %p54, %p55
      %p57 = scmp.ne.s32.totalorder %s43, %s44
      %p58 = scmp.eq.s32.totalorder %s22, 1
      %p59 = por %p57, %p58
      %p61 = scmp.ne.s32.totalorder %s44, %s60
      %p62 = scmp.eq.s32.totalorder %s22, 0
      %p63 = por %p61, %p62
      %s64 = sadd.s32 %s23, %s24
      %s65 = sadd.s32 %s35, %s31
      %s66 = ssub.s32 %s64, %s65
      %p67 = scmp.eq.s32.totalorder %s66, 0
      %s69 = sadd.s32 %s68, 1
      %s70 = scalar_select %p67, %s68, %s69
      %p73 = pneg %p67
      %p74 = scmp.eq.s32.totalorder %s16, 1
      %p75 = por %p73, %p74
      %p76 = scmp.ne.s32.totalorder %s68, %s71
      %p77 = scmp.eq.s32.totalorder %s16, 0
      %p78 = por %p76, %p77
      %p79 = scmp.ne.s32.totalorder %s68, %s71
      %p80 = scmp.eq.s32.totalorder %s21, 1
      %p81 = por %p79, %p80
      %p82 = scmp.ne.s32.totalorder %s71, %s72
      %p83 = scmp.eq.s32.totalorder %s21, 0
      %p84 = por %p82, %p83
      %p85 = scmp.ne.s32.totalorder %s71, %s72
      %p86 = scmp.eq.s32.totalorder %s22, 1
      %p87 = por %p85, %p86
      %p89 = scmp.ne.s32.totalorder %s72, %s88
      %p90 = scmp.eq.s32.totalorder %s22, 0
      %p91 = por %p89, %p90
      %s92 = ssub.s32 %s23, %s35
      %p93 = scmp.eq.s32.totalorder %s92, 0
      %s95 = sadd.s32 %s94, 1
      %s96 = scalar_select %p93, %s94, %s95
      %p99 = pneg %p93
      %p100 = scmp.eq.s32.totalorder %s16, 1
      %p101 = por %p99, %p100
      %p102 = scmp.ne.s32.totalorder %s94, %s97
      %p103 = scmp.eq.s32.totalorder %s16, 0
      %p104 = por %p102, %p103
      %p105 = scmp.ne.s32.totalorder %s94, %s97
      %p106 = scmp.eq.s32.totalorder %s21, 1
      %p107 = por %p105, %p106
      %p108 = scmp.ne.s32.totalorder %s97, %s98
      %p109 = scmp.eq.s32.totalorder %s21, 0
      %p110 = por %p108, %p109
      %p111 = scmp.ne.s32.totalorder %s97, %s98
      %p112 = scmp.eq.s32.totalorder %s22, 1
      %p113 = por %p111, %p112
      %p115 = scmp.ne.s32.totalorder %s98, %s114
      %p116 = scmp.eq.s32.totalorder %s22, 0
      %p117 = por %p115, %p116
      %s118 = ssub.s32 %s23, %s35
      %p119 = scmp.eq.s32.totalorder %s118, 0
      %s121 = sadd.s32 %s120, 1
      %s122 = scalar_select %p119, %s120, %s121
      %p125 = pneg %p119
      %p126 = scmp.eq.s32.totalorder %s16, 1
      %p127 = por %p125, %p126
      %p128 = scmp.ne.s32.totalorder %s120, %s123
      %p129 = scmp.eq.s32.totalorder %s16, 0
      %p130 = por %p128, %p129
      %p131 = scmp.ne.s32.totalorder %s120, %s123
      %p132 = scmp.eq.s32.totalorder %s21, 1
      %p133 = por %p131, %p132
      %p134 = scmp.ne.s32.totalorder %s123, %s124
      %p135 = scmp.eq.s32.totalorder %s21, 0
      %p136 = por %p134, %p135
      %p137 = scmp.ne.s32.totalorder %s123, %s124
      %p138 = scmp.eq.s32.totalorder %s22, 1
      %p139 = por %p137, %p138
      %p141 = scmp.ne.s32.totalorder %s124, %s140
      %p142 = scmp.eq.s32.totalorder %s22, 0
      %p143 = por %p141, %p142
      %p144 = scmp.le.s32.totalorder 1, %s16
      %p145 = scmp.lt.s32.totalorder %s16, 3
      %p146 = pnand %p144, %p145
      %p147 = pneg %p146
      // Predicated region
      $region9: #{tpu_custom_call.1} parent=5 // pred_check
        _
      $region10: #{tpu_custom_call.1} parent=5 // pred_check_branch
        %149 = sbr.rel (%p146) target = $region12
      $region11: #{tpu_custom_call.1} parent=5 // pred_region
        %s150 = ssub.s32 %s16, 1
      $region12: #{tpu_custom_call.1} parent=5 // pred_fallthru
        _
      %p151 = scmp.lt.s32.totalorder %s16, 2
      // Predicated region
      $region13: #{tpu_custom_call.1} parent=5 // pred_check
        %p152 = pneg %p151
      $region14: #{tpu_custom_call.1} parent=5 // pred_check_branch
        %154 = sbr.rel (%p152) target = $region16
      $region15: #{tpu_custom_call.1} parent=5 // pred_region
        // Predicated region
        $region17: #{tpu_custom_call.1} parent=15 // pred_check
          %p155 = pneg %p50
        $region18: #{tpu_custom_call.1} parent=15 // pred_check_branch
          %157 = sbr.rel (%p155) target = $region20
        $region19: #{tpu_custom_call.1} parent=15 // pred_region
          %s158 = sadd.s32 %s23, %s24
          %s159 = smul.u32 2, %s158
          %p160 = scmp.lt.s32.totalorder %s159, 3
          %s161 = scalar_select %p160, %s159, 3
          %s162 = smul.addr %s161, 8
          %s163 = scalar_lea.vmem %s0, %s162
          %s164 = sadd.s32 %s23, %s24
          %s165 = smul.u32 2, %s164
        $region20: #{tpu_custom_call.1} parent=15 // pred_fallthru
          _
        // Predicated region
        $region21: #{tpu_custom_call.1} parent=15 // pred_check
          %p166 = pneg %p78
        $region22: #{tpu_custom_call.1} parent=15 // pred_check_branch
          %168 = sbr.rel (%p166) target = $region24
        $region23: #{tpu_custom_call.1} parent=15 // pred_region
          %s169 = sadd.s32 %s23, %s24
          %s170 = smul.u32 2, %s169
          %p171 = scmp.lt.s32.totalorder %s170, 3
          %s172 = scalar_select %p171, %s170, 3
          %s173 = smul.addr %s172, 8
          %s174 = scalar_lea.vmem %s1, %s173
          %s175 = sadd.s32 %s23, %s24
          %s176 = smul.u32 2, %s175
        $region24: #{tpu_custom_call.1} parent=15 // pred_fallthru
          _
      $region16: #{tpu_custom_call.1} parent=5 // pred_fallthru
        _
      %p177 = scmp.le.s32.totalorder 1, %s16
      %p178 = scmp.lt.s32.totalorder %s16, 3
      %p179 = pnand %p177, %p178
      %p180 = pneg %p179
      // Predicated region
      $region25: #{tpu_custom_call.1} parent=5 // pred_check
        _
      $region26: #{tpu_custom_call.1} parent=5 // pred_check_branch
        %182 = sbr.rel (%p179) target = $region28
      $region27: #{tpu_custom_call.1} parent=5 // pred_region
        %s183 = ssub.s32 %s16, 1
        %s184 = sadd.s32 %s25, %s26
        %s185 = smul.u32 2, %s184
        %p186 = scmp.lt.s32.totalorder %s185, 3
        %s187 = scalar_select %p186, %s185, 3
        %s188 = smul.addr %s187, 8
        %s189 = scalar_lea.vmem %s0, %s188
        %p190 = pneg %p56
        %p191 = pneg %p53
        %s192 = sadd.s32 %s25, %s26
        %s193 = smul.u32 2, %s192
        %p194 = scmp.lt.s32.totalorder %s193, 3
        %s195 = scalar_select %p194, %s193, 3
        %s196 = smul.addr %s195, 8
        %s197 = scalar_lea.vmem %s1, %s196
        %p198 = pneg %p84
        %p199 = pneg %p81
        %p200 = pneg %p110
        %p201 = pneg %p107
        %s202 = sand.u32 %s97, 1
        %s203 = scalar_lea.sflag [#allocation5], %s202
        %s204 = sand.u32 %s97, 1
        %s205 = smul.addr %s204, 8
        %s206 = scalar_lea.vmem [#allocation4], %s205
        %p207 = pneg %p136
        %p208 = pneg %p133
        %s209 = sand.u32 %s123, 1
        %s210 = scalar_lea.sflag [#allocation7], %s209
        %s211 = sand.u32 %s123, 1
        %s212 = smul.addr %s211, 8
        %s213 = scalar_lea.vmem [#allocation6], %s212
        %s214 = sadd.s32 %s25, %s26
        %s215 = smul.u32 2, %s214
        %p216 = scmp.lt.s32.totalorder %s215, 3
        %s217 = scalar_select %p216, %s215, 3
        %s218 = smul.addr %s217, 8
        %s219 = scalar_lea.vmem %s0, %s218
        %s220 = sadd.s32 %s25, %s26
        %s221 = smul.u32 2, %s220
        %s222 = sadd.s32 %s25, %s26
        %s223 = smul.u32 2, %s222
        %p224 = scmp.lt.s32.totalorder %s223, 3
        %s225 = scalar_select %p224, %s223, 3
        %s226 = smul.addr %s225, 8
        %s227 = scalar_lea.vmem %s1, %s226
        %s228 = sadd.s32 %s25, %s26
        %s229 = smul.u32 2, %s228
        %p230 = scmp.eq.s32.totalorder %s26, 0
        // Predicated region
        $region29: #{tpu_custom_call.1} parent=27 // pred_check
          %p231 = pneg %p230
        $region30: #{tpu_custom_call.1} parent=27 // pred_check_branch
          %233 = sbr.rel (%p231) target = $region32
        $region31: #{tpu_custom_call.1} parent=27 // pred_region
          %vm234 = vcmask 7168
          %235 = vst.msk [vmem:[#allocation2] sm:$0xff] %vm234, 0.0
          %236 = vst.msk [vmem:[#allocation2 + $0x8] sm:$0xff] %vm234, 0.0
          %237 = vst.msk [vmem:[#allocation3] sm:$0xff] %vm234, 0.0
          %238 = vst.msk [vmem:[#allocation3 + $0x8] sm:$0xff] %vm234, 0.0
        $region32: #{tpu_custom_call.1} parent=27 // pred_fallthru
          _
        %v239 = vld [vmem:[%s219] sm:$0xff]
        %v240 = vld [vmem:[%s219 + $0x8] sm:$0xff]
        %v241 = vld [vmem:[%s227] sm:$0xff]
        %v242 = vld [vmem:[%s227 + $0x8] sm:$0xff]
        %243 = vmax.xlane.f32.xlu0 %v239
        %v244 = vpop.xlane.xlu0 %243
        %245 = vmax.xlane.f32.xlu0 %v240
        %v246 = vpop.xlane.xlu0 %245
        %v247 = vsub.f32 %v239, %v244
        %v248 = vsub.f32 %v240, %v246
        %v249 = vmul.f32 %v247, 1.442695
        %v250 = vpow.pop %v249
        %v251 = vmul.f32 %v248, 1.442695
        %v252 = vpow.pop %v251
        %253 = vadd.xlane.f32.xlu0 %v250
        %v254 = vpop.xlane.xlu0 %253
        %255 = vadd.xlane.f32.xlu0 %v252
        %v256 = vpop.xlane.xlu0 %255
        %v257 = vlog2.pop %v254
        %v258 = vmul.f32 %v257, 0.6931472
        %v259 = vlog2.pop %v256
        %v260 = vmul.f32 %v259, 0.6931472
        %v261 = vadd.f32 %v258, %v244
        %v262 = vadd.f32 %v260, %v246
        %v263 = vlaneseq
        %v264 = vand.u32 %v263, 127
        %265 = vset.pattern.permute.xlu0 0
        %266 = vperm.xlu0 %265, %v241
        %v267 = vpop.permute.xlu0 %266
        %268 = vset.pattern.permute.xlu0 0
        %269 = vperm.xlu0 %268, %v242
        %v270 = vpop.permute.xlu0 %269
        %vm271 = vcmp.eq.s32.totalorder %v264, %v267
        %vm272 = vcmp.eq.s32.totalorder %v264, %v270
        %v273 = vsel %vm271, %v239, 0.0
        %v274 = vsel %vm272, %v240, 0.0
        %275 = vadd.xlane.f32.xlu0 %v273
        %v276 = vpop.xlane.xlu0 %275
        %277 = vadd.xlane.f32.xlu0 %v274
        %v278 = vpop.xlane.xlu0 %277
        %vm279 = vcmp.ne.s32.totalorder %v241, 4294967295
        %vm280 = vcmp.ne.s32.totalorder %v242, 4294967295
        %v281 = vld [vmem:[#allocation2] sm:$0xff]
        %v282 = vld [vmem:[#allocation2 + $0x8] sm:$0xff]
        %v283 = vsub.f32 %v261, %v276
        %v284 = vsub.f32 %v262, %v278
        %v285 = vsel %vm279, %v283, 0.0
        %v286 = vsel %vm280, %v284, 0.0
        %v287 = vadd.f32 %v281, %v285
        %v288 = vadd.f32 %v282, %v286
        %vm289 = vcmask 7168
        %290 = vst.msk [vmem:[#allocation2] sm:$0xff] %vm289, %v287
        %291 = vst.msk [vmem:[#allocation2 + $0x8] sm:$0xff] %vm289, %v288
        %v292 = vld [vmem:[#allocation3] sm:$0xff]
        %v293 = vld [vmem:[#allocation3 + $0x8] sm:$0xff]
        %v294 = vsel %vm279, 1, 0
        %v295 = vsel %vm280, 1, 0
        %v296 = vcvt.s32.f32 %v294
        %v297 = vcvt.s32.f32 %v295
        %v298 = vadd.f32 %v292, %v296
        %v299 = vadd.f32 %v293, %v297
        %300 = vst.msk [vmem:[#allocation3] sm:$0xff] %vm289, %v298
        %301 = vst.msk [vmem:[#allocation3 + $0x8] sm:$0xff] %vm289, %v299
        // Predicated region
        $region33: #{tpu_custom_call.1} parent=27 // pred_check
          %p302 = pneg %p230
        $region34: #{tpu_custom_call.1} parent=27 // pred_check_branch
          %304 = sbr.rel (%p302) target = $region36
        $region35: #{tpu_custom_call.1} parent=27 // pred_region
          %v305 = vld [vmem:[#allocation2] sm:$0xff]
          %v306 = vld [vmem:[#allocation2 + $0x8] sm:$0xff]
          %v307 = vsel %vm289, %v305, 0.0
          %v308 = vsel %vm289, %v306, 0.0
          %v309 = vadd.f32 %v307, %v308
          %310 = vadd.xlane.f32.xlu0 %v309
          %v311 = vpop.xlane.xlu0 %310
          %v312 = vrot.slane %v311, 4
          %v313 = vadd.f32 %v311, %v312
          %v314 = vrot.slane %v313, 2
          %v315 = vadd.f32 %v313, %v314
          %v316 = vrot.slane %v315, 1
          %v317 = vadd.f32 %v315, %v316
          %s318 = vtos %v317
          %v319 = vstv %s318
          %v320 = vadd.f32 %v319, 0.0
          %321 = vst [vmem:[%s206] sm:$0xff] %v320
          %v322 = vld [vmem:[#allocation3] sm:$0xff]
          %v323 = vld [vmem:[#allocation3 + $0x8] sm:$0xff]
          %v324 = vsel %vm289, %v322, 0.0
          %v325 = vsel %vm289, %v323, 0.0
          %v326 = vadd.f32 %v324, %v325
          %327 = vadd.xlane.f32.xlu0 %v326
          %v328 = vpop.xlane.xlu0 %327
          %v329 = vrot.slane %v328, 4
          %v330 = vadd.f32 %v328, %v329
          %v331 = vrot.slane %v330, 2
          %v332 = vadd.f32 %v330, %v331
          %v333 = vrot.slane %v332, 1
          %v334 = vadd.f32 %v332, %v333
          %s335 = vtos %v334
          %v336 = vstv %s335
          %v337 = vadd.f32 %v336, 0.0
          %338 = vst [vmem:[%s213] sm:$0xff] %v337
        $region36: #{tpu_custom_call.1} parent=27 // pred_fallthru
          _
        %s339 = sand.u32 %s97, 1
        %s340 = scalar_lea.sflag [#allocation5], %s339
        %s341 = sand.u32 %s97, 1
        %s342 = smul.addr %s341, 8
        %s343 = scalar_lea.vmem [#allocation4], %s342
        %s344 = sand.u32 %s123, 1
        %s345 = scalar_lea.sflag [#allocation7], %s344
        %s346 = sand.u32 %s123, 1
        %s347 = smul.addr %s346, 8
        %s348 = scalar_lea.vmem [#allocation6], %s347
        // Predicated region
        $region37: #{tpu_custom_call.1} parent=27 // pred_check
          %p349 = pneg %p107
        $region38: #{tpu_custom_call.1} parent=27 // pred_check_branch
          %351 = sbr.rel (%p349) target = $region40
        $region39: #{tpu_custom_call.1} parent=27 // pred_region
          %s353 = ssub.s32 128, 128
          %354 = vsyncadd %s340, %s353
          %s355 = smul.addr %s25, 128
          %s356 = scalar_lea.hbm %s2, %s355
          %s358 = sshll.u32 %s343, 4
          %s359 = int_to_ptr.vmem [resolvable:$true] %s358
          %361 = dma.vmem_to_hbm [thread:$0]  %s359, 128, %s356, %s340
        $region40: #{tpu_custom_call.1} parent=27 // pred_fallthru
          _
        // Predicated region
        $region41: #{tpu_custom_call.1} parent=27 // pred_check
          %p362 = pneg %p133
        $region42: #{tpu_custom_call.1} parent=27 // pred_check_branch
          %364 = sbr.rel (%p362) target = $region44
        $region43: #{tpu_custom_call.1} parent=27 // pred_region
          %s366 = ssub.s32 128, 128
          %367 = vsyncadd %s345, %s366
          %s368 = smul.addr %s25, 128
          %s369 = scalar_lea.hbm %s3, %s368
          %s371 = sshll.u32 %s348, 4
          %s372 = int_to_ptr.vmem [resolvable:$true] %s371
          %374 = dma.vmem_to_hbm [thread:$0]  %s372, 128, %s369, %s345
        $region44: #{tpu_custom_call.1} parent=27 // pred_fallthru
          _
      $region28: #{tpu_custom_call.1} parent=5 // pred_fallthru
        _
      %p375 = scmp.le.s32.totalorder 2, %s16
      // Predicated region
      $region45: #{tpu_custom_call.1} parent=5 // pred_check
        %p376 = pneg %p375
      $region46: #{tpu_custom_call.1} parent=5 // pred_check_branch
        %378 = sbr.rel (%p376) target = $region48
      $region47: #{tpu_custom_call.1} parent=5 // pred_region
        %s379 = ssub.s32 %s16, 2
        // Predicated region
        $region49: #{tpu_custom_call.1} parent=47 // pred_check
          %p380 = pneg %p113
        $region50: #{tpu_custom_call.1} parent=47 // pred_check_branch
          %382 = sbr.rel (%p380) target = $region52
        $region51: #{tpu_custom_call.1} parent=47 // pred_region
          %s383 = sand.u32 %s98, 1
          %s384 = scalar_lea.sflag [#allocation5], %s383
          %s385 = sand.u32 %s98, 1
          %s386 = smul.addr %s385, 8
          %s387 = scalar_lea.vmem [#allocation4], %s386
          %388 = dma.done %s384, 128
        $region52: #{tpu_custom_call.1} parent=47 // pred_fallthru
          _
        // Predicated region
        $region53: #{tpu_custom_call.1} parent=47 // pred_check
          %p389 = pneg %p139
        $region54: #{tpu_custom_call.1} parent=47 // pred_check_branch
          %391 = sbr.rel (%p389) target = $region56
        $region55: #{tpu_custom_call.1} parent=47 // pred_region
          %s392 = sand.u32 %s124, 1
          %s393 = scalar_lea.sflag [#allocation7], %s392
          %s394 = sand.u32 %s124, 1
          %s395 = smul.addr %s394, 8
          %s396 = scalar_lea.vmem [#allocation6], %s395
          %397 = dma.done %s393, 128
        $region56: #{tpu_custom_call.1} parent=47 // pred_fallthru
          _
      $region48: #{tpu_custom_call.1} parent=5 // pred_fallthru
        _
    $region6: #{tpu_custom_call.1} parent=1 // loop_footer
      %s20 = sadd.s32 1, %s16
    $region7: #{tpu_custom_call.1} parent=1 // loop_footer_branch
      %15 = sbr.rel target = $region3
    $region8: #{tpu_custom_call.1} parent=1 // loop_exit
      _
    %398 = vsyncpa [#allocation5], 1
    %s399 = scalar_lea.sflag [#allocation5], 1
    %400 = vsyncpa %s399, 1
    %401 = vsyncpa [#allocation7], 1
    %s402 = scalar_lea.sflag [#allocation7], 1
    %403 = vsyncpa %s402, 1

</llo_original>
